<compile_context>
chip_gen: v6e
topology: v6e:2x2x1
jax: 0.10.0
libtpu: 0.0.40
codegen_flags: <defaults>
</compile_context>

<pallas_src>
import math

import jax
import jax.numpy as jnp
from jax.experimental import pallas as pl
from jax.experimental.pallas import tpu as pltpu


# ---------------------------------------------------------------------------
# Kernel
# ---------------------------------------------------------------------------
def _make_kernel(has_bias):
    """Kernel body. Grid = (B_tiles, C_tiles, F_tiles); F is the reduction axis."""

    def kernel(*refs):
        if has_bias:
            x_ref, w_ref, b_ref, o_ref, acc_ref = refs
        else:
            x_ref, w_ref, o_ref, acc_ref = refs
            b_ref = None

        f = pl.program_id(2)

        @pl.when(f == 0)
        def _init():
            acc_ref[...] = jnp.zeros_like(acc_ref)

        # Accumulate in f32 regardless of input dtype (matches torch fp32 math,
        # avoids bf16 VPU emulation on v5e).
        x = x_ref[...].astype(jnp.float32)              # (Bt, Ct, Ft)
        w = w_ref[...].astype(jnp.float32)              # (Ct, Ft)
        acc_ref[...] += jnp.sum(x * w[None, :, :], axis=-1)

        @pl.when(f == pl.num_programs(2) - 1)
        def _finalize():
            res = acc_ref[...]
            if has_bias:
                res = res + b_ref[...].astype(jnp.float32)  # (1, Ct) bcast over Bt
            o_ref[...] = res.astype(o_ref.dtype)

    return kernel


# ---------------------------------------------------------------------------
# Tile selection (chip-aware, (8,128)-aligned)
# ---------------------------------------------------------------------------
def _vmem_capacity_bytes():
    try:
        return int(pltpu.get_tpu_info().vmem_capacity_bytes)
    except Exception:
        return 128 * 1024 * 1024  # v5e/v6e default


def _largest_tile(dim, base, max_tile):
    """Largest t <= max_tile with t % base == 0 and dim % t == 0, else None."""
    t = (min(dim, max_tile) // base) * base
    while t >= base:
        if dim % t == 0:
            return t
        t -= base
    return None


def _choose_tiles(B, C, F, itemsize, x_block_budget):
    # Output lane axis: prefer Ct as a multiple of 128 (lane-dense vst), else
    # full C (the only other layout the (8,128) rule allows).
    Ct = _largest_tile(C, 128, 512) or C
    # F tile: multiple of 128, sized so a (>=8, Ct, Ft) slab stays near budget.
    ft_budget = max(128, x_block_budget // (itemsize * Ct * 8))
    Ft = _largest_tile(F, 128, ft_budget) or F
    # Batch tile: multiple of 8 (output sublane alignment), fill the budget.
    bt_budget = max(8, x_block_budget // (itemsize * Ct * Ft))
    Bt = _largest_tile(B, 8, bt_budget) or B
    # TODO(synk): dims that are large *and* not divisible by 8/128 fall back to
    # full-extent blocks and may exceed VMEM; pad inputs upstream in that case.
    return Bt, Ct, Ft


# ---------------------------------------------------------------------------
# Wrapper
# ---------------------------------------------------------------------------
def element_wise_layer(x, weight, bias=None, block_sizes=None):
    """out[b, c] = sum_f x[b, c, f] * weight[c, f] (+ bias[c])."""
    B, C, F = x.shape
    assert weight.shape == (C, F)
    out_dtype = jnp.result_type(x.dtype, weight.dtype)
    itemsize = jnp.dtype(x.dtype).itemsize

    # Generation-aware sizing: smaller blocks + lower VMEM ceiling on 64 MiB
    # parts (v7x), bigger blocks on 128 MiB parts (v5e/v6e).
    vmem_cap = _vmem_capacity_bytes()
    if vmem_cap <= 64 * 1024 * 1024:
        x_block_budget = 2 * 1024 * 1024
        vmem_limit = min(48 * 1024 * 1024, (vmem_cap * 3) // 4)
    else:
        x_block_budget = 4 * 1024 * 1024
        vmem_limit = 96 * 1024 * 1024

    if block_sizes is None:
        Bt, Ct, Ft = _choose_tiles(B, C, F, itemsize, x_block_budget)
    else:
        Bt, Ct, Ft = block_sizes
    assert B % Bt == 0 and C % Ct == 0 and F % Ft == 0, (Bt, Ct, Ft)
    grid = (B // Bt, C // Ct, F // Ft)

    has_bias = bias is not None
    inputs = [x, weight]
    in_specs = [
        # x tile follows all three grid axes.
        pl.BlockSpec((Bt, Ct, Ft), lambda i, j, f: (i, j, f)),
        # weight tile is independent of the batch-tile axis (reused across B).
        pl.BlockSpec((Ct, Ft), lambda i, j, f: (j, f)),
    ]
    if has_bias:
        inputs.append(bias.reshape(1, C))
        in_specs.append(pl.BlockSpec((1, Ct), lambda i, j, f: (0, j)))

    bytes_accessed = (B * C * F + C * F) * itemsize
    bytes_accessed += B * C * jnp.dtype(out_dtype).itemsize
    if has_bias:
        bytes_accessed += C * jnp.dtype(bias.dtype).itemsize

    return pl.pallas_call(
        _make_kernel(has_bias),
        out_shape=jax.ShapeDtypeStruct((B, C), out_dtype),
        grid_spec=pltpu.PrefetchScalarGridSpec(
            num_scalar_prefetch=0,
            grid=grid,
            in_specs=in_specs,
            # Same output block across the F axis -> resident accumulator tile.
            out_specs=pl.BlockSpec((Bt, Ct), lambda i, j, f: (i, j)),
            scratch_shapes=[pltpu.VMEM((Bt, Ct), jnp.float32)],
        ),
        compiler_params=pltpu.CompilerParams(
            # B/C tiles may shard across TensorCores (2 TCs on v7x); F is reduction.
            dimension_semantics=("parallel", "parallel", "arbitrary"),
            vmem_limit_bytes=int(vmem_limit),
        ),
        cost_estimate=pl.CostEstimate(
            flops=2 * B * C * F,
            transcendentals=0,
            bytes_accessed=int(bytes_accessed),
        ),
    )(*inputs)


def init_params(key, in_features, out_features, dtype=jnp.float32):
    """U(-stdv, stdv), stdv = 1/sqrt(out_features) — matches reset_parameters."""
    stdv = 1.0 / math.sqrt(out_features)
    kw, kb = jax.random.split(key)
    weight = jax.random.uniform(kw, (in_features, out_features),
                                minval=-stdv, maxval=stdv, dtype=dtype)
    bias = jax.random.uniform(kb, (in_features,),
                              minval=-stdv, maxval=stdv, dtype=dtype)
    return weight, bias


def _reference(x, weight, bias):
    out = jnp.sum(x.astype(jnp.float32) * weight.astype(jnp.float32)[None], axis=2)
    if bias is not None:
        out = out + bias.astype(jnp.float32)[None, :]
    return out.astype(jnp.result_type(x.dtype, weight.dtype))


if __name__ == "__main__":
    key = jax.random.PRNGKey(0)
    k1, k2, k3, k4 = jax.random.split(key, 4)

    # Case 1: small shapes implied by the module (single-tile path).
    B, Cin, Fout = 2, 8, 32
    x = jax.random.normal(k1, (B, Cin, Fout), dtype=jnp.float32)
    weight, bias = init_params(k2, Cin, Fout)
    out = jax.block_until_ready(element_wise_layer(x, weight, bias))
    assert out.shape == (B, Cin)
    assert jnp.allclose(out, _reference(x, weight, bias), atol=1e-5, rtol=1e-5)

    # Case 2: exercise the tiled / F-accumulating path (forced small tiles) and
    # the bias=None fast path.
    B2, C2, F2 = 16, 256, 512
    x2 = jax.random.normal(k3, (B2, C2, F2), dtype=jnp.float32)
    w2, b2 = init_params(k4, C2, F2)
    out2 = jax.block_until_ready(
        element_wise_layer(x2, w2, b2, block_sizes=(8, 128, 128)))
    assert jnp.allclose(out2, _reference(x2, w2, b2), atol=1e-4, rtol=1e-4)

    out3 = jax.block_until_ready(element_wise_layer(x2, w2, None))
    assert jnp.allclose(out3, _reference(x2, w2, None), atol=1e-4, rtol=1e-4)

    print("KERNEL_OK")
</pallas_src>

<mosaic_0001>
module attributes {stable_mosaic.version = 11 : i64} {
  func.func @kernel(%arg0: i32, %arg1: i32, %arg2: i32, %arg3: memref<2x8x32xf32, #tpu.memory_space<vmem>>, %arg4: memref<8x32xf32, #tpu.memory_space<vmem>>, %arg5: memref<1x8xf32, #tpu.memory_space<vmem>>, %arg6: memref<2x8xf32, #tpu.memory_space<vmem>>, %arg7: memref<2x8xf32, #tpu.memory_space<vmem>>) attributes {dimension_semantics = [#tpu.dimension_semantics<parallel>, #tpu.dimension_semantics<parallel>, #tpu.dimension_semantics<arbitrary>], iteration_bounds = array<i64: 1, 1, 1>, scalar_prefetch = 0 : i64, scratch_operands = 1 : i64, tpu.core_type = #tpu.core_type<tc>, window_params = [{transform_indices = @transform_0, window_bounds = array<i64: 2, 8, 32>}, {transform_indices = @transform_1, window_bounds = array<i64: 8, 32>}, {transform_indices = @transform_2, window_bounds = array<i64: 1, 8>}, {transform_indices = @transform_3, window_bounds = array<i64: 2, 8>}]} {
    %c0_i32 = arith.constant 0 : i32
    %0 = arith.cmpi eq, %arg2, %c0_i32 : i32
    %1 = arith.extui %0 : i1 to i32
    %c0_i32_0 = arith.constant 0 : i32
    %2 = arith.cmpi ne, %1, %c0_i32_0 : i32
    scf.if %2 {
      %cst_11 = arith.constant 0.000000e+00 : f32
      %15 = vector.broadcast %cst_11 : f32 to vector<2x8xf32>
      %c0_12 = arith.constant 0 : index
      %c0_13 = arith.constant 0 : index
      %16 = vector.load %arg7[%c0_12, %c0_13] : memref<2x8xf32, #tpu.memory_space<vmem>>, vector<2x8xf32>
      tpu.vector_store %arg7[%c0_12, %c0_13], %15 {strides = array<i32>} : memref<2x8xf32, #tpu.memory_space<vmem>>, vector<2x8xf32>,
    } else {
    }
    %c0 = arith.constant 0 : index
    %c0_1 = arith.constant 0 : index
    %c0_2 = arith.constant 0 : index
    %3 = vector.load %arg3[%c0, %c0_1, %c0_2] : memref<2x8x32xf32, #tpu.memory_space<vmem>>, vector<2x8x32xf32>
    %c0_3 = arith.constant 0 : index
    %c0_4 = arith.constant 0 : index
    %4 = vector.load %arg4[%c0_3, %c0_4] : memref<8x32xf32, #tpu.memory_space<vmem>>, vector<8x32xf32>
    %c0_5 = arith.constant 0 : index
    %c0_6 = arith.constant 0 : index
    %5 = vector.load %arg7[%c0_5, %c0_6] : memref<2x8xf32, #tpu.memory_space<vmem>>, vector<2x8xf32>
    %6 = vector.shape_cast %4 : vector<8x32xf32> to vector<1x8x32xf32>
    %7 = vector.broadcast %6 : vector<1x8x32xf32> to vector<2x8x32xf32>
    %8 = arith.mulf %3, %7 : vector<2x8x32xf32>
    %cst = arith.constant dense<0.000000e+00> : vector<2x8xf32>
    %9 = vector.multi_reduction <add>, %8, %cst [2] : vector<2x8x32xf32> to vector<2x8xf32>
    %10 = arith.addf %5, %9 : vector<2x8xf32>
    %c0_7 = arith.constant 0 : index
    %c0_8 = arith.constant 0 : index
    %11 = vector.load %arg7[%c0_7, %c0_8] : memref<2x8xf32, #tpu.memory_space<vmem>>, vector<2x8xf32>
    tpu.vector_store %arg7[%c0_7, %c0_8], %10 {strides = array<i32>} : memref<2x8xf32, #tpu.memory_space<vmem>>, vector<2x8xf32>,
    %c0_i32_9 = arith.constant 0 : i32
    %12 = arith.cmpi eq, %arg2, %c0_i32_9 : i32
    %13 = arith.extui %12 : i1 to i32
    %c0_i32_10 = arith.constant 0 : i32
    %14 = arith.cmpi ne, %13, %c0_i32_10 : i32
    scf.if %14 {
      %c0_11 = arith.constant 0 : index
      %c0_12 = arith.constant 0 : index
      %15 = vector.load %arg7[%c0_11, %c0_12] : memref<2x8xf32, #tpu.memory_space<vmem>>, vector<2x8xf32>
      %c0_13 = arith.constant 0 : index
      %c0_14 = arith.constant 0 : index
      %16 = vector.load %arg5[%c0_13, %c0_14] : memref<1x8xf32, #tpu.memory_space<vmem>>, vector<1x8xf32>
      %17 = vector.broadcast %16 : vector<1x8xf32> to vector<2x8xf32>
      %18 = arith.addf %15, %17 : vector<2x8xf32>
      %c0_15 = arith.constant 0 : index
      %c0_16 = arith.constant 0 : index
      %19 = vector.load %arg6[%c0_15, %c0_16] : memref<2x8xf32, #tpu.memory_space<vmem>>, vector<2x8xf32>
      tpu.vector_store %arg6[%c0_15, %c0_16], %18 {strides = array<i32>} : memref<2x8xf32, #tpu.memory_space<vmem>>, vector<2x8xf32>,
    } else {
    }
    return
  }
  func.func @transform_0(%arg0: i32, %arg1: i32, %arg2: i32) -> (i32, i32, i32) {
    %c0_i32 = arith.constant 0 : i32
    return %arg0, %arg1, %arg2 : i32, i32, i32
  }
  func.func @transform_1(%arg0: i32, %arg1: i32, %arg2: i32) -> (i32, i32) {
    %c0_i32 = arith.constant 0 : i32
    return %arg1, %arg2 : i32, i32
  }
  func.func @transform_2(%arg0: i32, %arg1: i32, %arg2: i32) -> (i32, i32) {
    %c0_i32 = arith.constant 0 : i32
    %c0_i32_0 = arith.constant 0 : i32
    return %c0_i32, %arg1 : i32, i32
  }
  func.func @transform_3(%arg0: i32, %arg1: i32, %arg2: i32) -> (i32, i32) {
    %c0_i32 = arith.constant 0 : i32
    return %arg0, %arg1 : i32, i32
  }
}

</mosaic_0001>

<llo_original>
// kernel: tpu_custom_call.1
$region0: #{tpu_custom_call.1}
  #allocation0 [shape = 'u32[]', space=smem, size = 0x4, offset = 0x4, fixed_abs, tag = 'smem constant byte address 0x4 - core index']
  #allocation1 [shape = 'u32[144,128]{1,0:T(1,128)}', space=vmem, size = 0x12000, scoped, tag = 'internal scratch']
  #allocation2 [shape = 'f32[2,8]{1,0:T(2,128)}', space=vmem, size = 0x400, scoped, tag = 'scratch operand']
  %s0 = inlined_call_operand.hbm [shape: f32[2,8,32], index: 0, kind: input, shape index: {}]
  %s1 = inlined_call_operand.hbm [shape: f32[8,32], index: 1, kind: input, shape index: {}]
  %s2 = inlined_call_operand.vmem [shape: f32[1,8], index: 2, kind: input, shape index: {}]
  %s3 = inlined_call_operand.hbm [shape: f32[2,8], index: 3, kind: output, shape index: {}]
  %s4 = sld [smem:[#allocation0]]
  $region38: #{tpu_custom_call.1} parent=0
    _
  %s6 = ssub.s32 1, %s4
  %s7 = scalar_select 0, %s6, %s4
  $region1: #{tpu_custom_call.1} parent=0
    #allocation3 [shape = 'u8[8192]{0}', space=vmem, size = 0x2000, scoped, tag = 'input window, operand 0, single buffered']
    #allocation4 [shape = 's32[1]{0}', space=sflag, size = 0x4, scoped, tag = 'scoped memory for tpu_custom_call.1']
    #allocation5 [shape = 's32[1]{0}', space=sflag, size = 0x4, scoped, tag = 'scoped memory for tpu_custom_call.1']
    #allocation6 [shape = 'u8[4096]{0}', space=vmem, size = 0x1000, scoped, tag = 'input window, operand 1, single buffered']
    #allocation7 [shape = 's32[1]{0}', space=sflag, size = 0x4, scoped, tag = 'scoped memory for tpu_custom_call.1']
    #allocation8 [shape = 'u8[1024]{0}', space=vmem, size = 0x400, scoped, tag = 'output window, operand 0, single buffered']
    %8 = vsyncpa [#allocation4], 0
    %9 = vsyncpa [#allocation7], 0
    %10 = vsyncpa [#allocation5], 0
    // Predicated region
    $region2: #{tpu_custom_call.1} parent=1 // pred_check
      _
    $region3: #{tpu_custom_call.1} parent=1 // pred_check_branch
      %12 = sbr.rel (0) target = $region5
    $region4: #{tpu_custom_call.1} parent=1 // pred_region
      %s14 = ssub.s32 256, 256
      %15 = vsyncadd [#allocation4], %s14
      %s16 = sshll.u32 [#allocation3], 4
      %s17 = int_to_ptr.vmem [resolvable:$true] %s16
      %22 = dma.hbm_to_vmem [thread:$0]  %s0, 256, %s17, [#allocation4], 128, 128, 8
    $region5: #{tpu_custom_call.1} parent=1 // pred_fallthru
      _
    // Predicated region
    $region6: #{tpu_custom_call.1} parent=1 // pred_check
      _
    $region7: #{tpu_custom_call.1} parent=1 // pred_check_branch
      %24 = sbr.rel (0) target = $region9
    $region8: #{tpu_custom_call.1} parent=1 // pred_region
      %s26 = ssub.s32 128, 128
      %27 = vsyncadd [#allocation7], %s26
      %s29 = sshll.u32 [#allocation6], 4
      %s30 = int_to_ptr.vmem [resolvable:$true] %s29
      %32 = dma.hbm_to_vmem [thread:$0]  %s1, 128, %s30, [#allocation7]
    $region9: #{tpu_custom_call.1} parent=1 // pred_fallthru
      _
    // Predicated region
    $region10: #{tpu_custom_call.1} parent=1 // pred_check
      _
    $region11: #{tpu_custom_call.1} parent=1 // pred_check_branch
      %34 = sbr.rel (0) target = $region13
    $region12: #{tpu_custom_call.1} parent=1 // pred_region
      _
    $region13: #{tpu_custom_call.1} parent=1 // pred_fallthru
      _
    // Predicated region
    $region14: #{tpu_custom_call.1} parent=1 // pred_check
      _
    $region15: #{tpu_custom_call.1} parent=1 // pred_check_branch
      %36 = sbr.rel (0) target = $region17
    $region16: #{tpu_custom_call.1} parent=1 // pred_region
      %37 = dma.done [#allocation4], 256
    $region17: #{tpu_custom_call.1} parent=1 // pred_fallthru
      _
    // Predicated region
    $region18: #{tpu_custom_call.1} parent=1 // pred_check
      _
    $region19: #{tpu_custom_call.1} parent=1 // pred_check_branch
      %39 = sbr.rel (0) target = $region21
    $region20: #{tpu_custom_call.1} parent=1 // pred_region
      %40 = dma.done [#allocation7], 128
    $region21: #{tpu_custom_call.1} parent=1 // pred_fallthru
      _
    %p41 = scmp.eq.s32.totalorder 0, 0
    // Predicated region
    $region22: #{tpu_custom_call.1} parent=1 // pred_check
      %p42 = pneg %p41
    $region23: #{tpu_custom_call.1} parent=1 // pred_check_branch
      %44 = sbr.rel (%p42) target = $region25
    $region24: #{tpu_custom_call.1} parent=1 // pred_region
      %vm45 = vcmask 58368
      %46 = vst.msk [vmem:[#allocation2] sm:$0x3] %vm45, 0.0
    $region25: #{tpu_custom_call.1} parent=1 // pred_fallthru
      _
    %v47 = vld [vmem:[#allocation3] sm:$0xff]
    %v48 = vld [vmem:[#allocation3 + $0x8] sm:$0xff]
    %v49 = vld [vmem:[#allocation6] sm:$0xff]
    %v50 = vld [vmem:[#allocation2] sm:$0x3]
    %v51 = vmul.f32 %v47, %v49
    %v52 = vmul.f32 %v48, %v49
    %vm53 = vcmask 261120
    %v54 = vsel %vm53, %v51, 0.0
    %55 = vadd.xlane.f32.xlu0 %v54
    %v56 = vpop.xlane.xlu0 %55
    %v57 = vsel %vm53, %v52, 0.0
    %58 = vadd.xlane.f32.xlu0 %v57
    %v59 = vpop.xlane.xlu0 %58
    %v62 = vlaneseq
    %v63 = vand.u32 %v62, 127
    %v64 = vlaneseq
    %v65 = vshrl.u32 %v64, 7
    %v66 = vsub.s32 %v63, %v65
    %v67 = vrot.slane %v56, %v66
    %v68 = vlaneseq
    %v69 = vshrl.u32 %v68, 7
    %v70 = vsub.s32 %v63, %v69
    %v71 = vrot.slane %v59, %v70
    %vm72 = vcmask 1041409
    %v73 = vsel %vm72, %v71, %v67
    %v75 = vadd.f32 %v50, %v73
    %vm76 = vcmask 58368
    %77 = vst.msk [vmem:[#allocation2] sm:$0x3] %vm76, %v75
    // Predicated region
    $region26: #{tpu_custom_call.1} parent=1 // pred_check
      %p78 = pneg %p41
    $region27: #{tpu_custom_call.1} parent=1 // pred_check_branch
      %80 = sbr.rel (%p78) target = $region29
    $region28: #{tpu_custom_call.1} parent=1 // pred_region
      %v81 = vld [vmem:[#allocation2] sm:$0x3]
      %v82 = vld [vmem:[%s2] sm:$0x1]
      %v84 = vlaneseq
      %v85 = vshrl.u32 %v84, 7
      %v86 = vsub.s32 0, %v85
      %v87 = vrot.slane %v82, %v86
      %v89 = vadd.f32 %v81, %v87
      %90 = vst.msk [vmem:[#allocation8] sm:$0x3] %vm76, %v89
    $region29: #{tpu_custom_call.1} parent=1 // pred_fallthru
      _
    // Predicated region
    $region30: #{tpu_custom_call.1} parent=1 // pred_check
      _
    $region31: #{tpu_custom_call.1} parent=1 // pred_check_branch
      %92 = sbr.rel (0) target = $region33
    $region32: #{tpu_custom_call.1} parent=1 // pred_region
      %s94 = ssub.s32 32, 32
      %95 = vsyncadd [#allocation5], %s94
      %s97 = sshll.u32 [#allocation8], 4
      %s98 = int_to_ptr.vmem [resolvable:$true] %s97
      %100 = dma.vmem_to_hbm [thread:$0]  %s98, 32, %s3, [#allocation5]
    $region33: #{tpu_custom_call.1} parent=1 // pred_fallthru
      _
    // Predicated region
    $region34: #{tpu_custom_call.1} parent=1 // pred_check
      _
    $region35: #{tpu_custom_call.1} parent=1 // pred_check_branch
      %102 = sbr.rel (0) target = $region37
    $region36: #{tpu_custom_call.1} parent=1 // pred_region
      %103 = dma.done [#allocation5], 32
    $region37: #{tpu_custom_call.1} parent=1 // pred_fallthru
      _
    %104 = vsyncpa [#allocation4], 1
    %105 = vsyncpa [#allocation7], 1
    %106 = vsyncpa [#allocation5], 1

</llo_original>
